<compile_context>
chip_gen: v6e
topology: v6e:2x2x1
jax: 0.10.0
libtpu: 0.0.40
codegen_flags: <defaults>
</compile_context>

<pallas_src>
import jax
import jax.numpy as jnp
from jax import lax
from jax.experimental import pallas as pl
from jax.experimental.pallas import tpu as pltpu

LANES = 128


def _int_pow(x, power):
    if power == 1:
        return x
    return x ** power


def _choose_tiles(n):
    """Pick (npad, ti): lane-dense tiles, bounded intermediates, >=2 i-blocks."""
    npad = ((max(n, 1) + LANES - 1) // LANES) * LANES
    ti = LANES
    for cand in (512, 256):
        if (npad % cand == 0                       # ti must divide npad
                and npad * cand <= 512 * 1024      # <= ~2 MiB f32 intermediates
                and npad // cand >= 2):            # >= 2 i-blocks (v7x megacore)
            ti = cand
            break
    return npad, ti


def _make_kernel(power, n, ti, npad):
    def kernel(skip_ref, l_col_ref, l_row_ref, out_ref):
        i_blk = pl.program_id(0)

        l_j = l_col_ref[...]                              # (Npad, 1) all bars (j)
        l_i = l_row_ref[...]                              # (1, TI)   this block (i)

        # Tie-break indices, generated per block (nothing N^2 beyond `beats`).
        j_idx = lax.broadcasted_iota(jnp.int32, (npad, 1), 0)
        i_idx = lax.broadcasted_iota(jnp.int32, (1, ti), 1) + i_blk * ti

        # beats[j, i] = bar j ranks strictly above bar i.
        # Padded bars (value -inf, index >= n) can never beat a real bar.
        gt = l_j > l_i                                    # (Npad, TI)
        eq = l_j == l_i
        tie = j_idx < i_idx
        beats = gt | (eq & tie)

        # Descending rank of each bar in this block: VPU adds across the
        # sublane-vreg blocks of `beats`, one XLU reduce at the end.
        rank = jnp.sum(beats.astype(jnp.float32), axis=0, keepdims=True)  # (1, TI)

        skip_f = skip_ref[0].astype(jnp.float32)          # exact: rank < 2^24
        valid_i = i_idx < n
        in_top = valid_i & (rank < skip_f)

        top = _int_pow(1.0 - l_i, power)                  # bars in the top `skip`
        tail = _int_pow(l_i, power)                       # remaining bars
        out_ref[...] = jnp.where(valid_i,
                                 jnp.where(in_top, top, tail),
                                 jnp.zeros_like(l_i))     # lane-dense (1, TI) store

    return kernel


class PartialSumBarcodeLengthsFlexibleSkip:
    """JAX/Pallas port of the PyTorch module (no learnable parameters)."""

    def __init__(self, dim, power=1):
        self.dim = dim
        self.power = power

    def __call__(self, interval_info, skip):
        intervals, issublevel = interval_info
        dgm = jnp.asarray(intervals[self.dim], dtype=jnp.float32)   # (N, 2)
        n = dgm.shape[0]

        # Column selection per `issublevel` + one-time cleanup (glue).
        if issublevel:
            start, end = dgm[:, 0], dgm[:, 1]
        else:
            end, start = dgm[:, 0], dgm[:, 1]
        lengths = end - start
        lengths = jnp.where(lengths == jnp.inf, 0.0, lengths)
        lengths = jnp.where(jnp.isnan(lengths), 0.0, lengths)

        npad, ti = _choose_tiles(n)
        # -inf sentinel: padded bars never out-rank real bars (see kernel).
        lp = jnp.pad(lengths, (0, npad - n), constant_values=-jnp.inf)

        l_col = lp.reshape(npad, 1)    # resident j operand (sublane-oriented)
        l_row = lp.reshape(1, npad)    # lane-dense i operand, tiled per block

        skip_arr = jnp.asarray([skip], dtype=jnp.int32)
        num_i = npad // ti

        contrib = pl.pallas_call(
            _make_kernel(self.power, n, ti, npad),
            out_shape=jax.ShapeDtypeStruct((1, npad), jnp.float32),
            grid_spec=pltpu.PrefetchScalarGridSpec(
                num_scalar_prefetch=1,
                grid=(num_i,),
                in_specs=[
                    pl.BlockSpec((npad, 1), lambda i, s: (0, 0)),   # resident
                    pl.BlockSpec((1, ti), lambda i, s: (0, i)),
                ],
                out_specs=pl.BlockSpec((1, ti), lambda i, s: (0, i)),
            ),
            compiler_params=pltpu.CompilerParams(
                dimension_semantics=("parallel",),
                vmem_limit_bytes=48 * 1024 * 1024,   # within v7x's 64 MiB
            ),
        )(skip_arr, l_col, l_row)

        # Per-bar contributions (padding already zeroed) -> scalar.
        return jnp.sum(contrib)


def reference_forward(interval_info, skip, dim, power):
    """Pure-JAX reference mirroring the PyTorch code (uses a real sort)."""
    intervals, issublevel = interval_info
    dgm = jnp.asarray(intervals[dim], dtype=jnp.float32)
    if issublevel:
        start, end = dgm[:, 0], dgm[:, 1]
    else:
        end, start = dgm[:, 0], dgm[:, 1]
    lengths = end - start
    lengths = jnp.where(lengths == jnp.inf, 0.0, lengths)
    lengths = jnp.where(jnp.isnan(lengths), 0.0, lengths)
    sortl = jnp.sort(lengths)[::-1]
    return (jnp.sum(_int_pow(1.0 - sortl[:skip], power))
            + jnp.sum(_int_pow(sortl[skip:], power)))


if __name__ == "__main__":
    key = jax.random.PRNGKey(0)
    k0, k1, k2, k3, k4, k5, k6, k7 = jax.random.split(key, 8)

    # Homology-dim-0 diagram: 12 bars, include an infinite bar and a NaN bar.
    births0 = jax.random.uniform(k0, (12,), dtype=jnp.float32)
    deaths0 = births0 + jax.random.uniform(k1, (12,), dtype=jnp.float32)
    deaths0 = deaths0.at[0].set(jnp.inf)     # essential class -> length 0
    deaths0 = deaths0.at[3].set(jnp.nan)     # degenerate bar  -> length 0
    dgm0 = jnp.stack([births0, deaths0], axis=1)          # (12, 2)

    # Homology-dim-1 diagram: 7 bars (finite).
    births1 = jax.random.uniform(k2, (7,), dtype=jnp.float32)
    deaths1 = births1 + jax.random.uniform(k3, (7,), dtype=jnp.float32)
    dgm1 = jnp.stack([births1, deaths1], axis=1)          # (7, 2)

    intervals = [dgm0, dgm1]
    interval_info = (intervals, True)
    interval_info_sup = (intervals, False)   # superlevel -> swapped columns

    # 600-bar diagram: Npad = 640, TI = 128, 5 i-blocks.
    births2 = jax.random.uniform(k4, (600,), dtype=jnp.float32)
    deaths2 = births2 + jax.random.uniform(k5, (600,), dtype=jnp.float32)
    deaths2 = deaths2.at[7].set(jnp.inf)
    dgm_big = jnp.stack([births2, deaths2], axis=1)       # (600, 2)
    interval_info_big = ([dgm_big], True)

    # 1000-bar diagram: Npad = 1024, TI = 512, 2 i-blocks (v7x megacore path).
    births3 = jax.random.uniform(k6, (1000,), dtype=jnp.float32)
    deaths3 = births3 + jax.random.uniform(k7, (1000,), dtype=jnp.float32)
    dgm_1k = jnp.stack([births3, deaths3], axis=1)        # (1000, 2)
    interval_info_1k = ([dgm_1k], True)

    ok = True
    cases = [
        (interval_info, 0, 2, 3),
        (interval_info, 1, 1, 2),
        (interval_info, 0, 1, 0),
        (interval_info_sup, 1, 1, 2),
        (interval_info_big, 0, 1, 5),
        (interval_info_1k, 0, 2, 100),
    ]
    for info, dim, power, skip in cases:
        mod = PartialSumBarcodeLengthsFlexibleSkip(dim=dim, power=power)
        got = mod(info, skip)
        jax.block_until_ready(got)
        want = reference_forward(info, skip, dim, power)
        jax.block_until_ready(want)
        if not jnp.allclose(got, want, rtol=1e-5, atol=1e-5):
            ok = False
            print(f"mismatch dim={dim} power={power} skip={skip}: "
                  f"{float(got)} vs {float(want)}")

    if ok:
        print("KERNEL_OK")
</pallas_src>

<mosaic_0001>
module attributes {stable_mosaic.version = 11 : i64} {
  func.func @kernel(%arg0: i32, %arg1: memref<1xi32, #tpu.memory_space<smem>>, %arg2: memref<128x1xf32, #tpu.memory_space<vmem>>, %arg3: memref<1x128xf32, #tpu.memory_space<vmem>>, %arg4: memref<1x128xf32, #tpu.memory_space<vmem>>) attributes {dimension_semantics = [#tpu.dimension_semantics<parallel>], iteration_bounds = array<i64: 1>, scalar_prefetch = 1 : i64, scratch_operands = 0 : i64, tpu.core_type = #tpu.core_type<tc>, window_params = [{pipeline_mode = #tpu.pipeline_mode<synchronous>, transform_indices = @transform_0, window_bounds = array<i64: 128, 1>}, {transform_indices = @transform_1, window_bounds = array<i64: 1, 128>}, {transform_indices = @transform_2, window_bounds = array<i64: 1, 128>}]} {
    %c0 = arith.constant 0 : index
    %c0_0 = arith.constant 0 : index
    %0 = vector.load %arg2[%c0, %c0_0] : memref<128x1xf32, #tpu.memory_space<vmem>>, vector<128x1xf32>
    %c0_1 = arith.constant 0 : index
    %c0_2 = arith.constant 0 : index
    %1 = vector.load %arg3[%c0_1, %c0_2] : memref<1x128xf32, #tpu.memory_space<vmem>>, vector<1x128xf32>
    %2 = tpu.iota {dimensions = array<i32: 0>} : vector<128x1xi32>
    %3 = tpu.iota {dimensions = array<i32: 1>} : vector<1x128xi32>
    %c128_i32 = arith.constant 128 : i32
    %4 = arith.muli %arg0, %c128_i32 : i32
    %5 = vector.broadcast %4 : i32 to vector<1x128xi32>
    %6 = arith.addi %3, %5 : vector<1x128xi32>
    %7 = vector.broadcast %0 : vector<128x1xf32> to vector<128x128xf32>
    %8 = vector.broadcast %1 : vector<1x128xf32> to vector<128x128xf32>
    %9 = arith.cmpf ogt, %7, %8 : vector<128x128xf32>
    %10 = vector.broadcast %0 : vector<128x1xf32> to vector<128x128xf32>
    %11 = vector.broadcast %1 : vector<1x128xf32> to vector<128x128xf32>
    %12 = arith.cmpf oeq, %10, %11 : vector<128x128xf32>
    %13 = vector.broadcast %2 : vector<128x1xi32> to vector<128x128xi32>
    %14 = vector.broadcast %6 : vector<1x128xi32> to vector<128x128xi32>
    %15 = arith.cmpi slt, %13, %14 : vector<128x128xi32>
    %16 = arith.andi %12, %15 : vector<128x128xi1>
    %17 = arith.ori %9, %16 : vector<128x128xi1>
    %18 = arith.extui %17 : vector<128x128xi1> to vector<128x128xi32>
    %19 = arith.sitofp %18 : vector<128x128xi32> to vector<128x128xf32>
    %cst = arith.constant dense<0.000000e+00> : vector<128xf32>
    %20 = vector.multi_reduction <add>, %19, %cst [0] : vector<128x128xf32> to vector<128xf32>
    %21 = vector.shape_cast %20 : vector<128xf32> to vector<1x128xf32>
    %c0_3 = arith.constant 0 : index
    %22 = memref.load %arg1[%c0_3] : memref<1xi32, #tpu.memory_space<smem>>
    %23 = arith.sitofp %22 : i32 to f32
    %c12_i32 = arith.constant 12 : i32
    %24 = vector.broadcast %c12_i32 : i32 to vector<1x128xi32>
    %25 = arith.cmpi slt, %6, %24 : vector<1x128xi32>
    %26 = vector.broadcast %23 : f32 to vector<1x128xf32>
    %27 = arith.cmpf olt, %21, %26 : vector<1x128xf32>
    %28 = arith.andi %25, %27 : vector<1x128xi1>
    %cst_4 = arith.constant 1.000000e+00 : f32
    %29 = vector.broadcast %cst_4 : f32 to vector<1x128xf32>
    %30 = arith.subf %29, %1 : vector<1x128xf32>
    %31 = arith.mulf %30, %30 : vector<1x128xf32>
    %32 = arith.mulf %1, %1 : vector<1x128xf32>
    %33 = arith.select %28, %31, %32 : vector<1x128xi1>, vector<1x128xf32>
    %cst_5 = arith.constant 0.000000e+00 : f32
    %34 = vector.broadcast %cst_5 : f32 to vector<1x128xf32>
    %35 = arith.select %25, %33, %34 : vector<1x128xi1>, vector<1x128xf32>
    %c0_6 = arith.constant 0 : index
    %c0_7 = arith.constant 0 : index
    %36 = vector.load %arg4[%c0_6, %c0_7] : memref<1x128xf32, #tpu.memory_space<vmem>>, vector<1x128xf32>
    tpu.vector_store %arg4[%c0_6, %c0_7], %35 {strides = array<i32>} : memref<1x128xf32, #tpu.memory_space<vmem>>, vector<1x128xf32>,
    return
  }
  func.func @transform_0(%arg0: i32, %arg1: memref<1xi32, #tpu.memory_space<smem>>) -> (i32, i32) {
    %c0_i32 = arith.constant 0 : i32
    %c0_i32_0 = arith.constant 0 : i32
    %c0_i32_1 = arith.constant 0 : i32
    return %c0_i32, %c0_i32_0 : i32, i32
  }
  func.func @transform_1(%arg0: i32, %arg1: memref<1xi32, #tpu.memory_space<smem>>) -> (i32, i32) {
    %c0_i32 = arith.constant 0 : i32
    %c0_i32_0 = arith.constant 0 : i32
    return %c0_i32, %arg0 : i32, i32
  }
  func.func @transform_2(%arg0: i32, %arg1: memref<1xi32, #tpu.memory_space<smem>>) -> (i32, i32) {
    %c0_i32 = arith.constant 0 : i32
    %c0_i32_0 = arith.constant 0 : i32
    return %c0_i32, %arg0 : i32, i32
  }
}

</mosaic_0001>

<llo_original>
// kernel: tpu_custom_call.1
$region0: #{tpu_custom_call.1}
  #allocation0 [shape = 'u32[]', space=smem, size = 0x4, offset = 0x4, fixed_abs, tag = 'smem constant byte address 0x4 - core index']
  #allocation1 [shape = 'u32[144,128]{1,0:T(1,128)}', space=vmem, size = 0x12000, scoped, tag = 'internal scratch']
  #allocation2 [shape = 's32[1]{0}', space=sflag, size = 0x4, scoped, tag = 'scoped memory for tpu_custom_call.1']
  #allocation3 [shape = 's32[1]{0:T(128)S(6)}', space=smem, size = 0x200, scoped, tag = 'prefetched SMEM operand 0']
  %s0 = inlined_call_operand.<no memory space> [shape: s32[1], index: 0, kind: input, shape index: {}]
  %s1 = inlined_call_operand.vmem [shape: f32[128,1], index: 1, kind: input, shape index: {}]
  %s2 = inlined_call_operand.vmem [shape: f32[1,128], index: 2, kind: input, shape index: {}]
  %s3 = inlined_call_operand.hbm [shape: f32[1,128], index: 3, kind: output, shape index: {}]
  %s4 = sld [smem:[#allocation0]]
  $region18: #{tpu_custom_call.1} parent=0
    _
  %s6 = ssub.s32 1, %s4
  %s7 = scalar_select 0, %s6, %s4
  %8 = sst [smem:[#allocation3]] %s0
  $region1: #{tpu_custom_call.1} parent=0
    #allocation4 [shape = 'u8[512]{0}', space=vmem, size = 0x400, scoped, tag = 'output window, operand 0, single buffered']
    #allocation5 [shape = 's32[1]{0}', space=sflag, size = 0x4, scoped, tag = 'scoped memory for tpu_custom_call.1']
    %9 = vsyncpa [#allocation5], 0
    // Predicated region
    $region2: #{tpu_custom_call.1} parent=1 // pred_check
      _
    $region3: #{tpu_custom_call.1} parent=1 // pred_check_branch
      %11 = sbr.rel (0) target = $region5
    $region4: #{tpu_custom_call.1} parent=1 // pred_region
      _
    $region5: #{tpu_custom_call.1} parent=1 // pred_fallthru
      _
    // Predicated region
    $region6: #{tpu_custom_call.1} parent=1 // pred_check
      _
    $region7: #{tpu_custom_call.1} parent=1 // pred_check_branch
      %13 = sbr.rel (0) target = $region9
    $region8: #{tpu_custom_call.1} parent=1 // pred_region
      _
    $region9: #{tpu_custom_call.1} parent=1 // pred_fallthru
      _
    %v14 = vld [vmem:[%s1] sm:$0xff]
    %v15 = vld [vmem:[%s1 + $0x8] sm:$0xff]
    %v16 = vld [vmem:[%s1 + $0x10] sm:$0xff]
    %v17 = vld [vmem:[%s1 + $0x18] sm:$0xff]
    %v18 = vld [vmem:[%s1 + $0x20] sm:$0xff]
    %v19 = vld [vmem:[%s1 + $0x28] sm:$0xff]
    %v20 = vld [vmem:[%s1 + $0x30] sm:$0xff]
    %v21 = vld [vmem:[%s1 + $0x38] sm:$0xff]
    %v22 = vld [vmem:[%s1 + $0x40] sm:$0xff]
    %v23 = vld [vmem:[%s1 + $0x48] sm:$0xff]
    %v24 = vld [vmem:[%s1 + $0x50] sm:$0xff]
    %v25 = vld [vmem:[%s1 + $0x58] sm:$0xff]
    %v26 = vld [vmem:[%s1 + $0x60] sm:$0xff]
    %v27 = vld [vmem:[%s1 + $0x68] sm:$0xff]
    %v28 = vld [vmem:[%s1 + $0x70] sm:$0xff]
    %v29 = vld [vmem:[%s1 + $0x78] sm:$0xff]
    %v30 = vld [vmem:[%s2] sm:$0x1]
    %v31 = vlaneseq
    %v32 = vshrl.u32 %v31, 7
    %v33 = vadd.s32 %v32, 8
    %v34 = vadd.s32 %v32, 16
    %v35 = vadd.s32 %v32, 24
    %v36 = vadd.s32 %v32, 32
    %v37 = vadd.s32 %v32, 40
    %v38 = vadd.s32 %v32, 48
    %v39 = vadd.s32 %v32, 56
    %v40 = vadd.s32 %v32, 64
    %v41 = vadd.s32 %v32, 72
    %v42 = vadd.s32 %v32, 80
    %v43 = vadd.s32 %v32, 88
    %v44 = vadd.s32 %v32, 96
    %v45 = vadd.s32 %v32, 104
    %v46 = vadd.s32 %v32, 112
    %v47 = vadd.s32 %v32, 120
    %v48 = vlaneseq
    %v49 = vand.u32 %v48, 127
    %s50 = smul.u32 0, 128
    %v51 = vstv %s50
    %v52 = vadd.s32 %v49, %v51
    %54 = vset.pattern.permute.xlu0 0
    %55 = vperm.xlu0 %54, %v14
    %v56 = vpop.permute.xlu0 %55
    %59 = vset.pattern.permute.xlu0 0
    %60 = vperm.xlu0 %59, %v15
    %v61 = vpop.permute.xlu0 %60
    %64 = vset.pattern.permute.xlu0 0
    %65 = vperm.xlu0 %64, %v16
    %v66 = vpop.permute.xlu0 %65
    %69 = vset.pattern.permute.xlu0 0
    %70 = vperm.xlu0 %69, %v17
    %v71 = vpop.permute.xlu0 %70
    %74 = vset.pattern.permute.xlu0 0
    %75 = vperm.xlu0 %74, %v18
    %v76 = vpop.permute.xlu0 %75
    %79 = vset.pattern.permute.xlu0 0
    %80 = vperm.xlu0 %79, %v19
    %v81 = vpop.permute.xlu0 %80
    %84 = vset.pattern.permute.xlu0 0
    %85 = vperm.xlu0 %84, %v20
    %v86 = vpop.permute.xlu0 %85
    %89 = vset.pattern.permute.xlu0 0
    %90 = vperm.xlu0 %89, %v21
    %v91 = vpop.permute.xlu0 %90
    %94 = vset.pattern.permute.xlu0 0
    %95 = vperm.xlu0 %94, %v22
    %v96 = vpop.permute.xlu0 %95
    %99 = vset.pattern.permute.xlu0 0
    %100 = vperm.xlu0 %99, %v23
    %v101 = vpop.permute.xlu0 %100
    %104 = vset.pattern.permute.xlu0 0
    %105 = vperm.xlu0 %104, %v24
    %v106 = vpop.permute.xlu0 %105
    %109 = vset.pattern.permute.xlu0 0
    %110 = vperm.xlu0 %109, %v25
    %v111 = vpop.permute.xlu0 %110
    %114 = vset.pattern.permute.xlu0 0
    %115 = vperm.xlu0 %114, %v26
    %v116 = vpop.permute.xlu0 %115
    %119 = vset.pattern.permute.xlu0 0
    %120 = vperm.xlu0 %119, %v27
    %v121 = vpop.permute.xlu0 %120
    %124 = vset.pattern.permute.xlu0 0
    %125 = vperm.xlu0 %124, %v28
    %v126 = vpop.permute.xlu0 %125
    %129 = vset.pattern.permute.xlu0 0
    %130 = vperm.xlu0 %129, %v29
    %v131 = vpop.permute.xlu0 %130
    %v134 = vlaneseq
    %v135 = vshrl.u32 %v134, 7
    %v136 = vsub.s32 0, %v135
    %v137 = vrot.slane %v30, %v136
    %vm139 = vcmp.gt.f32.partialorder %v56, %v137
    %vm140 = vcmp.gt.f32.partialorder %v61, %v137
    %vm141 = vcmp.gt.f32.partialorder %v66, %v137
    %vm142 = vcmp.gt.f32.partialorder %v71, %v137
    %vm143 = vcmp.gt.f32.partialorder %v76, %v137
    %vm144 = vcmp.gt.f32.partialorder %v81, %v137
    %vm145 = vcmp.gt.f32.partialorder %v86, %v137
    %vm146 = vcmp.gt.f32.partialorder %v91, %v137
    %vm147 = vcmp.gt.f32.partialorder %v96, %v137
    %vm148 = vcmp.gt.f32.partialorder %v101, %v137
    %vm149 = vcmp.gt.f32.partialorder %v106, %v137
    %vm150 = vcmp.gt.f32.partialorder %v111, %v137
    %vm151 = vcmp.gt.f32.partialorder %v116, %v137
    %vm152 = vcmp.gt.f32.partialorder %v121, %v137
    %vm153 = vcmp.gt.f32.partialorder %v126, %v137
    %vm154 = vcmp.gt.f32.partialorder %v131, %v137
    %vm155 = vcmp.eq.f32.partialorder %v56, %v137
    %vm156 = vcmp.eq.f32.partialorder %v61, %v137
    %vm157 = vcmp.eq.f32.partialorder %v66, %v137
    %vm158 = vcmp.eq.f32.partialorder %v71, %v137
    %vm159 = vcmp.eq.f32.partialorder %v76, %v137
    %vm160 = vcmp.eq.f32.partialorder %v81, %v137
    %vm161 = vcmp.eq.f32.partialorder %v86, %v137
    %vm162 = vcmp.eq.f32.partialorder %v91, %v137
    %vm163 = vcmp.eq.f32.partialorder %v96, %v137
    %vm164 = vcmp.eq.f32.partialorder %v101, %v137
    %vm165 = vcmp.eq.f32.partialorder %v106, %v137
    %vm166 = vcmp.eq.f32.partialorder %v111, %v137
    %vm167 = vcmp.eq.f32.partialorder %v116, %v137
    %vm168 = vcmp.eq.f32.partialorder %v121, %v137
    %vm169 = vcmp.eq.f32.partialorder %v126, %v137
    %vm170 = vcmp.eq.f32.partialorder %v131, %v137
    %vm171 = vcmp.lt.s32.totalorder %v32, %v52
    %vm172 = vcmp.lt.s32.totalorder %v33, %v52
    %vm173 = vcmp.lt.s32.totalorder %v34, %v52
    %vm174 = vcmp.lt.s32.totalorder %v35, %v52
    %vm175 = vcmp.lt.s32.totalorder %v36, %v52
    %vm176 = vcmp.lt.s32.totalorder %v37, %v52
    %vm177 = vcmp.lt.s32.totalorder %v38, %v52
    %vm178 = vcmp.lt.s32.totalorder %v39, %v52
    %vm179 = vcmp.lt.s32.totalorder %v40, %v52
    %vm180 = vcmp.lt.s32.totalorder %v41, %v52
    %vm181 = vcmp.lt.s32.totalorder %v42, %v52
    %vm182 = vcmp.lt.s32.totalorder %v43, %v52
    %vm183 = vcmp.lt.s32.totalorder %v44, %v52
    %vm184 = vcmp.lt.s32.totalorder %v45, %v52
    %vm185 = vcmp.lt.s32.totalorder %v46, %v52
    %vm186 = vcmp.lt.s32.totalorder %v47, %v52
    %vm187 = vmand %vm155, %vm171
    %vm188 = vmand %vm156, %vm172
    %vm189 = vmand %vm157, %vm173
    %vm190 = vmand %vm158, %vm174
    %vm191 = vmand %vm159, %vm175
    %vm192 = vmand %vm160, %vm176
    %vm193 = vmand %vm161, %vm177
    %vm194 = vmand %vm162, %vm178
    %vm195 = vmand %vm163, %vm179
    %vm196 = vmand %vm164, %vm180
    %vm197 = vmand %vm165, %vm181
    %vm198 = vmand %vm166, %vm182
    %vm199 = vmand %vm167, %vm183
    %vm200 = vmand %vm168, %vm184
    %vm201 = vmand %vm169, %vm185
    %vm202 = vmand %vm170, %vm186
    %vm203 = vmor %vm139, %vm187
    %vm204 = vmor %vm140, %vm188
    %vm205 = vmor %vm141, %vm189
    %vm206 = vmor %vm142, %vm190
    %vm207 = vmor %vm143, %vm191
    %vm208 = vmor %vm144, %vm192
    %vm209 = vmor %vm145, %vm193
    %vm210 = vmor %vm146, %vm194
    %vm211 = vmor %vm147, %vm195
    %vm212 = vmor %vm148, %vm196
    %vm213 = vmor %vm149, %vm197
    %vm214 = vmor %vm150, %vm198
    %vm215 = vmor %vm151, %vm199
    %vm216 = vmor %vm152, %vm200
    %vm217 = vmor %vm153, %vm201
    %vm218 = vmor %vm154, %vm202
    %v219 = vsel %vm203, 1, 0
    %v220 = vsel %vm204, 1, 0
    %v221 = vsel %vm205, 1, 0
    %v222 = vsel %vm206, 1, 0
    %v223 = vsel %vm207, 1, 0
    %v224 = vsel %vm208, 1, 0
    %v225 = vsel %vm209, 1, 0
    %v226 = vsel %vm210, 1, 0
    %v227 = vsel %vm211, 1, 0
    %v228 = vsel %vm212, 1, 0
    %v229 = vsel %vm213, 1, 0
    %v230 = vsel %vm214, 1, 0
    %v231 = vsel %vm215, 1, 0
    %v232 = vsel %vm216, 1, 0
    %v233 = vsel %vm217, 1, 0
    %v234 = vsel %vm218, 1, 0
    %v235 = vcvt.s32.f32 %v219
    %v236 = vcvt.s32.f32 %v220
    %v237 = vcvt.s32.f32 %v221
    %v238 = vcvt.s32.f32 %v222
    %v239 = vcvt.s32.f32 %v223
    %v240 = vcvt.s32.f32 %v224
    %v241 = vcvt.s32.f32 %v225
    %v242 = vcvt.s32.f32 %v226
    %v243 = vcvt.s32.f32 %v227
    %v244 = vcvt.s32.f32 %v228
    %v245 = vcvt.s32.f32 %v229
    %v246 = vcvt.s32.f32 %v230
    %v247 = vcvt.s32.f32 %v231
    %v248 = vcvt.s32.f32 %v232
    %v249 = vcvt.s32.f32 %v233
    %v250 = vcvt.s32.f32 %v234
    %v251 = vadd.f32 %v235, %v236
    %v252 = vadd.f32 %v251, %v237
    %v253 = vadd.f32 %v252, %v238
    %v254 = vadd.f32 %v253, %v239
    %v255 = vadd.f32 %v254, %v240
    %v256 = vadd.f32 %v255, %v241
    %v257 = vadd.f32 %v256, %v242
    %v258 = vadd.f32 %v257, %v243
    %v259 = vadd.f32 %v258, %v244
    %v260 = vadd.f32 %v259, %v245
    %v261 = vadd.f32 %v260, %v246
    %v262 = vadd.f32 %v261, %v247
    %v263 = vadd.f32 %v262, %v248
    %v264 = vadd.f32 %v263, %v249
    %v265 = vadd.f32 %v264, %v250
    %v266 = vrot.slane %v265, 4
    %v267 = vadd.f32 %v265, %v266
    %v268 = vrot.slane %v267, 2
    %v269 = vadd.f32 %v267, %v268
    %v270 = vrot.slane %v269, 1
    %v271 = vadd.f32 %v269, %v270
    %s272 = sld [smem:[#allocation3]]
    %s273 = scvt.s32.f32 %s272
    %vm274 = vcmp.lt.s32.totalorder %v52, 12
    %v275 = vstv %s273
    %vm276 = vcmp.lt.f32.partialorder %v271, %v275
    %vm277 = vmand %vm274, %vm276
    %v278 = vsub.f32 1.0, %v30
    %v279 = vmul.f32 %v278, %v278
    %v280 = vmul.f32 %v30, %v30
    %v281 = vsel %vm277, %v279, %v280
    %v282 = vsel %vm274, %v281, 0.0
    %283 = vst [vmem:[#allocation4] sm:$0x1] %v282
    // Predicated region
    $region10: #{tpu_custom_call.1} parent=1 // pred_check
      _
    $region11: #{tpu_custom_call.1} parent=1 // pred_check_branch
      %285 = sbr.rel (0) target = $region13
    $region12: #{tpu_custom_call.1} parent=1 // pred_region
      %s287 = ssub.s32 16, 16
      %288 = vsyncadd [#allocation5], %s287
      %s290 = sshll.u32 [#allocation4], 4
      %s291 = int_to_ptr.vmem [resolvable:$true] %s290
      %293 = dma.vmem_to_hbm [thread:$0]  %s291, 16, %s3, [#allocation5]
    $region13: #{tpu_custom_call.1} parent=1 // pred_fallthru
      _
    // Predicated region
    $region14: #{tpu_custom_call.1} parent=1 // pred_check
      _
    $region15: #{tpu_custom_call.1} parent=1 // pred_check_branch
      %295 = sbr.rel (0) target = $region17
    $region16: #{tpu_custom_call.1} parent=1 // pred_region
      %296 = dma.done [#allocation5], 16
    $region17: #{tpu_custom_call.1} parent=1 // pred_fallthru
      _
    %297 = vsyncpa [#allocation5], 1

</llo_original>
